<compile_context>
chip_gen: v5e
topology: v5e:2x2
jax: 0.10.0
libtpu: 0.0.40
codegen_flags: <defaults>
</compile_context>

<pallas_src>
import jax
import jax.numpy as jnp
from jax.experimental import pallas as pl
from jax.experimental.pallas import tpu as pltpu

_TILE_BYTES = 2 << 20          # ~2 MiB per stream per block (safe for v7x's 64 MiB VMEM)
_MAX_FULL_COLS = 4096          # keep the whole last dim as one lane block up to this width
_TILE_COLS = 1024              # lane block for very wide last dims (multiple of 128)
_SUBLANE_BLOCK = 32            # row-block granularity (covers f32/bf16/int8 sublane packing)
_LANE_BLOCK = 4096             # 1-D block granularity in elements (multiple of 32*128)
_MIN_STEPS = 4                 # keep >= this many grid steps so DMA/compute overlap
_SMALL_CUTOFF_BYTES = 1 << 20  # below ~1 MiB plain XLA fusion beats pallas_call overhead


def _make_kernel(n_streamed: int):
    """Elementwise kernel specialized on the number of full-size (streamed) priors.

    Kernel signature (scalar-prefetch ref first): (params, Ej, Em, *priors, out)
    params (SMEM, f32[3]) = [1 - prior_wt, prior_wt, prior_wt * sum(scalar priors)].
    """

    def kernel(params_ref, ej_ref, em_ref, *rest):
        prior_refs = rest[:n_streamed]
        out_ref = rest[n_streamed]
        cw = params_ref[0]     # 1 - prior_wt
        w = params_ref[1]      # prior_wt
        wsp = params_ref[2]    # prior_wt * (sum of scalar priors)
        # Compute in f32 in-register regardless of the wire dtype; this kernel
        # is HBM-bandwidth bound on v5e/v6e/v7x, so the VALU ops are free.
        acc = cw * (em_ref[...].astype(jnp.float32) - ej_ref[...].astype(jnp.float32))
        acc = acc + wsp
        for p_ref in prior_refs:
            acc = acc + w * p_ref[...].astype(jnp.float32)
        out_ref[...] = acc.astype(out_ref.dtype)

    return kernel


def _plan(shape, itemsize):
    """Zero-copy view + block shape + grid for an elementwise pass over `shape`.

    Block shapes respect the TPU tiling rule (last dim a multiple of 128 or the
    full dim; second-to-last a multiple of 32 or the full dim), so no wrapper
    padding is needed: Pallas pads reads / masks writes on edge blocks.
    """
    if len(shape) == 0:
        return (1, 1), (1, 1), (1, 1)

    if len(shape) == 1:
        n = shape[0]
        target = max(_LANE_BLOCK, (_TILE_BYTES // itemsize) // _LANE_BLOCK * _LANE_BLOCK)
        bn = n if target >= n else target
        if pl.cdiv(n, bn) < _MIN_STEPS and n >= _MIN_STEPS * _LANE_BLOCK:
            bn = pl.cdiv(pl.cdiv(n, _MIN_STEPS), _LANE_BLOCK) * _LANE_BLOCK
        return (n,), (bn,), (pl.cdiv(n, bn),)

    # Rank >= 2: collapse leading dims into rows (zero-copy for the common
    # rank-2 case).
    # TODO(synk): for rank >= 3 inputs whose second-to-last dim is not a
    # multiple of 8 this reshape may relayout; a native-rank BlockSpec over the
    # leading dims would avoid that copy.
    cols = shape[-1]
    rows = 1
    for s in shape[:-1]:
        rows *= s
    bc = cols if cols <= _MAX_FULL_COLS else _TILE_COLS
    r_target = max(_SUBLANE_BLOCK,
                   (_TILE_BYTES // max(1, bc * itemsize)) // _SUBLANE_BLOCK * _SUBLANE_BLOCK)
    br = rows if r_target >= rows else r_target
    if (pl.cdiv(rows, br) * pl.cdiv(cols, bc) < _MIN_STEPS
            and rows >= _MIN_STEPS * _SUBLANE_BLOCK):
        br = pl.cdiv(pl.cdiv(rows, _MIN_STEPS), _SUBLANE_BLOCK) * _SUBLANE_BLOCK
    return (rows, cols), (br, bc), (pl.cdiv(rows, br), pl.cdiv(cols, bc))


def jsd_info_max_loss(Ej, Em, img_prior=None, txt_prior=None, prior_wt=0.1,
                      *, force_pallas=False):
    """Pallas TPU implementation of JSDInfoMaxLoss.forward (elementwise TOTAL_LOSS)."""
    Ej = jnp.asarray(Ej)
    Em = jnp.asarray(Em)
    assert Ej.shape == Em.shape, "Ej and Em must have the same shape"
    shape = Ej.shape
    total = int(Ej.size)

    # Split priors: scalar priors are folded into SMEM parameters (no HBM
    # stream); only full-size priors are streamed.
    w = jnp.asarray(prior_wt, jnp.float32)
    scalar_prior = jnp.zeros((), jnp.float32)
    streamed = []
    for p in (img_prior, txt_prior):
        if p is None:
            continue
        p = jnp.asarray(p)
        if p.size == 1:
            scalar_prior = scalar_prior + p.reshape(()).astype(jnp.float32)
        elif p.shape == shape:
            streamed.append(p)
        else:
            # TODO(synk): rare partial-broadcast prior; materializing it costs
            # one extra HBM stream. A per-prior BlockSpec over the broadcast
            # dims would avoid this.
            streamed.append(jnp.broadcast_to(p, shape))

    out_dtype = jnp.result_type(Ej.dtype, Em.dtype, *(p.dtype for p in streamed))
    if not jnp.issubdtype(out_dtype, jnp.floating):
        out_dtype = jnp.float32
    out_dtype = jnp.dtype(out_dtype)

    max_itemsize = max([Ej.dtype.itemsize, Em.dtype.itemsize, out_dtype.itemsize]
                       + [p.dtype.itemsize for p in streamed])

    # Tiny inputs: pallas_call launch + pipeline prologue exceed the work; let
    # XLA fuse it.
    if not force_pallas and total * max_itemsize < _SMALL_CUTOFF_BYTES:
        acc = (1.0 - w) * (Em.astype(jnp.float32) - Ej.astype(jnp.float32))
        prior = scalar_prior
        for p in streamed:
            prior = prior + p.astype(jnp.float32)
        return (acc + w * prior).astype(out_dtype)

    view_shape, block_shape, grid = _plan(shape, max_itemsize)

    # Zero-copy views (identity for the common rank-1 / rank-2 inputs).
    ej_v = Ej.reshape(view_shape)
    em_v = Em.reshape(view_shape)
    prior_vs = [p.reshape(view_shape) for p in streamed]

    # SMEM scalar-prefetch parameters: [1 - w, w, w * sum(scalar priors)].
    params = jnp.stack([1.0 - w, w, w * scalar_prior]).astype(jnp.float32)

    if len(grid) == 1:
        idx_map = lambda i, params_ref: (i,)
    else:
        idx_map = lambda i, j, params_ref: (i, j)
    tile_spec = pl.BlockSpec(block_shape, idx_map)

    n_arrays = 3 + len(streamed)           # Ej, Em, out (+ streamed priors)
    blk_elems = 1
    for b in block_shape:
        blk_elems *= b
    vmem_limit = n_arrays * 2 * blk_elems * max_itemsize + (4 << 20)
    vmem_limit = int(min(max(vmem_limit, 16 << 20), 64 << 20))

    flops = (4 + 2 * len(streamed)) * total
    bytes_accessed = total * (Ej.dtype.itemsize + Em.dtype.itemsize
                              + sum(p.dtype.itemsize for p in streamed)
                              + out_dtype.itemsize)

    # TODO(synk): if the consumer immediately reduces TOTAL_LOSS to a scalar
    # mean, fuse that reduction here (per-block partials + pl.when finalize,
    # divide by `total`) to drop the full-size output writeback stream.
    # TODO(synk): on v7x, verify in xprof that "parallel" grid axes shard over
    # both TensorCores; otherwise add a leading CORE_PARALLEL axis.
    out_view = pl.pallas_call(
        _make_kernel(len(streamed)),
        out_shape=jax.ShapeDtypeStruct(view_shape, out_dtype),
        grid_spec=pltpu.PrefetchScalarGridSpec(
            num_scalar_prefetch=1,
            grid=grid,
            in_specs=[tile_spec, tile_spec] + [tile_spec] * len(streamed),
            out_specs=tile_spec,
        ),
        compiler_params=pltpu.CompilerParams(
            dimension_semantics=("parallel",) * len(grid),
            vmem_limit_bytes=vmem_limit),
        cost_estimate=pl.CostEstimate(
            flops=int(flops), transcendentals=0, bytes_accessed=int(bytes_accessed)),
    )(params, ej_v, em_v, *prior_vs)

    return out_view.reshape(shape)


if __name__ == "__main__":
    key = jax.random.PRNGKey(0)
    k1, k2, k3, k4, k5 = jax.random.split(key, 5)

    B, N = 8, 128
    prior_wt = 0.1
    Ej = jax.random.normal(k1, (B, N), jnp.float32)
    Em = jax.random.normal(k2, (B, N), jnp.float32)
    img_prior_s = jax.random.normal(k3, ())                 # scalar prior (typical usage)
    txt_prior_s = jax.random.normal(k4, ())
    img_prior_full = jax.random.normal(k5, (B, N), jnp.float32)

    # 1) Both priors scalar -> SMEM path, only 3 HBM streams (Ej, Em, out).
    out = jax.block_until_ready(
        jsd_info_max_loss(Ej, Em, img_prior_s, txt_prior_s, prior_wt, force_pallas=True))
    ref = (1.0 - prior_wt) * (Em - Ej) + prior_wt * (img_prior_s + txt_prior_s)
    assert out.shape == Ej.shape
    assert jnp.allclose(out, ref, atol=1e-5, rtol=1e-5), "mismatch (scalar priors)"

    # 2) One full-size (streamed) prior + one scalar prior.
    out = jax.block_until_ready(
        jsd_info_max_loss(Ej, Em, img_prior_full, txt_prior_s, prior_wt, force_pallas=True))
    ref = (1.0 - prior_wt) * (Em - Ej) + prior_wt * (img_prior_full + txt_prior_s)
    assert jnp.allclose(out, ref, atol=1e-5, rtol=1e-5), "mismatch (streamed prior)"

    # 3) No priors.
    out = jax.block_until_ready(
        jsd_info_max_loss(Ej, Em, prior_wt=prior_wt, force_pallas=True))
    ref = (1.0 - prior_wt) * (Em - Ej)
    assert jnp.allclose(out, ref, atol=1e-5, rtol=1e-5), "mismatch (no priors)"

    # 4) bf16 inputs stream as bf16 (half the HBM bytes), computed in f32 in-register.
    Ej_b = Ej.astype(jnp.bfloat16)
    Em_b = Em.astype(jnp.bfloat16)
    out = jax.block_until_ready(
        jsd_info_max_loss(Ej_b, Em_b, prior_wt=prior_wt, force_pallas=True))
    ref = ((1.0 - prior_wt) * (Em_b.astype(jnp.float32) - Ej_b.astype(jnp.float32)))
    assert out.dtype == jnp.bfloat16
    assert jnp.allclose(out.astype(jnp.float32), ref, atol=2e-2, rtol=2e-2), "mismatch (bf16)"

    print("KERNEL_OK")
</pallas_src>

<mosaic_0001>
module attributes {stable_mosaic.version = 11 : i64} {
  func.func @kernel(%arg0: i32, %arg1: i32, %arg2: memref<3xf32, #tpu.memory_space<smem>>, %arg3: memref<8x128xf32, #tpu.memory_space<vmem>>, %arg4: memref<8x128xf32, #tpu.memory_space<vmem>>, %arg5: memref<8x128xf32, #tpu.memory_space<vmem>>) attributes {dimension_semantics = [#tpu.dimension_semantics<parallel>, #tpu.dimension_semantics<parallel>], iteration_bounds = array<i64: 1, 1>, scalar_prefetch = 1 : i64, scratch_operands = 0 : i64, tpu.core_type = #tpu.core_type<tc>, window_params = [{transform_indices = @transform_0, window_bounds = array<i64: 8, 128>}, {transform_indices = @transform_1, window_bounds = array<i64: 8, 128>}, {transform_indices = @transform_2, window_bounds = array<i64: 8, 128>}]} {
    %c0 = arith.constant 0 : index
    %0 = memref.load %arg2[%c0] : memref<3xf32, #tpu.memory_space<smem>>
    %c2 = arith.constant 2 : index
    %1 = memref.load %arg2[%c2] : memref<3xf32, #tpu.memory_space<smem>>
    %c0_0 = arith.constant 0 : index
    %c0_1 = arith.constant 0 : index
    %2 = vector.load %arg4[%c0_0, %c0_1] : memref<8x128xf32, #tpu.memory_space<vmem>>, vector<8x128xf32>
    %c0_2 = arith.constant 0 : index
    %c0_3 = arith.constant 0 : index
    %3 = vector.load %arg3[%c0_2, %c0_3] : memref<8x128xf32, #tpu.memory_space<vmem>>, vector<8x128xf32>
    %4 = arith.subf %2, %3 : vector<8x128xf32>
    %5 = vector.broadcast %0 : f32 to vector<8x128xf32>
    %6 = arith.mulf %5, %4 : vector<8x128xf32>
    %7 = vector.broadcast %1 : f32 to vector<8x128xf32>
    %8 = arith.addf %6, %7 : vector<8x128xf32>
    %c0_4 = arith.constant 0 : index
    %c0_5 = arith.constant 0 : index
    %9 = vector.load %arg5[%c0_4, %c0_5] : memref<8x128xf32, #tpu.memory_space<vmem>>, vector<8x128xf32>
    tpu.vector_store %arg5[%c0_4, %c0_5], %8 {strides = array<i32>} : memref<8x128xf32, #tpu.memory_space<vmem>>, vector<8x128xf32>,
    return
  }
  func.func @transform_0(%arg0: i32, %arg1: i32, %arg2: memref<3xf32, #tpu.memory_space<smem>>) -> (i32, i32) {
    %c0_i32 = arith.constant 0 : i32
    return %arg0, %arg1 : i32, i32
  }
  func.func @transform_1(%arg0: i32, %arg1: i32, %arg2: memref<3xf32, #tpu.memory_space<smem>>) -> (i32, i32) {
    %c0_i32 = arith.constant 0 : i32
    return %arg0, %arg1 : i32, i32
  }
  func.func @transform_2(%arg0: i32, %arg1: i32, %arg2: memref<3xf32, #tpu.memory_space<smem>>) -> (i32, i32) {
    %c0_i32 = arith.constant 0 : i32
    return %arg0, %arg1 : i32, i32
  }
}

</mosaic_0001>

<llo_original>
// kernel: tpu_custom_call.1
$region0: #{tpu_custom_call.1}
  #allocation0 [shape = 'u32[]', space=smem, size = 0x4, offset = 0x4, fixed_abs, tag = 'smem constant byte address 0x4 - core index']
  #allocation1 [shape = 'u32[72,128]{1,0:T(1,128)}', space=vmem, size = 0x9000, scoped, tag = 'internal scratch']
  #allocation2 [shape = 's32[1]{0}', space=sflag, size = 0x4, scoped, tag = 'scoped memory for tpu_custom_call.1']
  #allocation3 [shape = 'u8[512]{0}', space=smem, size = 0x200, scoped, tag = 'prefetched SMEM operand 0']
  %s0 = inlined_call_operand.hbm [shape: f32[3], index: 0, kind: input, shape index: {}]
  %s1 = inlined_call_operand.hbm [shape: f32[8,128], index: 1, kind: input, shape index: {}]
  %s2 = inlined_call_operand.hbm [shape: f32[8,128], index: 2, kind: input, shape index: {}]
  %s3 = inlined_call_operand.hbm [shape: f32[8,128], index: 3, kind: output, shape index: {}]
  %s4 = sld [smem:[#allocation0]]
  $region26: #{tpu_custom_call.1} parent=0
    _
  %s6 = ssub.s32 1, %s4
  %s7 = scalar_select 0, %s6, %s4
  %s9 = sshll.u32 %s0, 4
  %s10 = int_to_ptr.hbm [resolvable:$true] %s9
  %12 = dma.hbm_to_smem %s10, 16, [#allocation3], [#allocation2]
  %14 = dma.done [#allocation2], 16
  %15 = sfence
  $region1: #{tpu_custom_call.1} parent=0
    #allocation4 [shape = 'u8[4096]{0}', space=vmem, size = 0x1000, scoped, tag = 'input window, operand 1, single buffered']
    #allocation5 [shape = 's32[1]{0}', space=sflag, size = 0x4, scoped, tag = 'scoped memory for tpu_custom_call.1']
    #allocation6 [shape = 's32[1]{0}', space=sflag, size = 0x4, scoped, tag = 'scoped memory for tpu_custom_call.1']
    #allocation7 [shape = 'u8[4096]{0}', space=vmem, size = 0x1000, scoped, tag = 'input window, operand 2, single buffered']
    #allocation8 [shape = 's32[1]{0}', space=sflag, size = 0x4, scoped, tag = 'scoped memory for tpu_custom_call.1']
    #allocation9 [shape = 'u8[4096]{0}', space=vmem, size = 0x1000, scoped, tag = 'output window, operand 0, single buffered']
    %16 = vsyncpa [#allocation5], 0
    %17 = vsyncpa [#allocation8], 0
    %18 = vsyncpa [#allocation6], 0
    // Predicated region
    $region2: #{tpu_custom_call.1} parent=1 // pred_check
      _
    $region3: #{tpu_custom_call.1} parent=1 // pred_check_branch
      %20 = sbr.rel (0) target = $region5
    $region4: #{tpu_custom_call.1} parent=1 // pred_region
      %22 = vsyncadd [#allocation5], 0
      %s24 = sshll.u32 %s1, 4
      %s25 = int_to_ptr.hbm [resolvable:$true] %s24
      %s26 = sshll.u32 [#allocation4], 4
      %s27 = int_to_ptr.vmem [resolvable:$true] %s26
      %29 = dma.hbm_to_vmem [thread:$0]  %s25, 128, %s27, [#allocation5]
    $region5: #{tpu_custom_call.1} parent=1 // pred_fallthru
      _
    // Predicated region
    $region6: #{tpu_custom_call.1} parent=1 // pred_check
      _
    $region7: #{tpu_custom_call.1} parent=1 // pred_check_branch
      %31 = sbr.rel (0) target = $region9
    $region8: #{tpu_custom_call.1} parent=1 // pred_region
      %33 = vsyncadd [#allocation8], 0
      %s35 = sshll.u32 %s2, 4
      %s36 = int_to_ptr.hbm [resolvable:$true] %s35
      %s37 = sshll.u32 [#allocation7], 4
      %s38 = int_to_ptr.vmem [resolvable:$true] %s37
      %40 = dma.hbm_to_vmem [thread:$0]  %s36, 128, %s38, [#allocation8]
    $region9: #{tpu_custom_call.1} parent=1 // pred_fallthru
      _
    // Predicated region
    $region10: #{tpu_custom_call.1} parent=1 // pred_check
      _
    $region11: #{tpu_custom_call.1} parent=1 // pred_check_branch
      %42 = sbr.rel (0) target = $region13
    $region12: #{tpu_custom_call.1} parent=1 // pred_region
      %44 = dma.done [#allocation5], 128
    $region13: #{tpu_custom_call.1} parent=1 // pred_fallthru
      _
    // Predicated region
    $region14: #{tpu_custom_call.1} parent=1 // pred_check
      _
    $region15: #{tpu_custom_call.1} parent=1 // pred_check_branch
      %46 = sbr.rel (0) target = $region17
    $region16: #{tpu_custom_call.1} parent=1 // pred_region
      %48 = dma.done [#allocation8], 128
    $region17: #{tpu_custom_call.1} parent=1 // pred_fallthru
      _
    %s49 = sld [smem:[#allocation3]]
    %s50 = sld [smem:[#allocation3 + $0x2]]
    %v51 = vld [vmem:[#allocation7] sm:$0xff]
    %v52 = vld [vmem:[#allocation4] sm:$0xff]
    %v53 = vsub.f32 %v51, %v52
    %v54 = vstv %s49
    %v55 = vmul.f32 %v54, %v53
    %v56 = vstv %s50
    %v57 = vadd.f32 %v55, %v56
    %58 = vst [vmem:[#allocation9] sm:$0xff] %v57
    // Predicated region
    $region18: #{tpu_custom_call.1} parent=1 // pred_check
      _
    $region19: #{tpu_custom_call.1} parent=1 // pred_check_branch
      %60 = sbr.rel (0) target = $region21
    $region20: #{tpu_custom_call.1} parent=1 // pred_region
      %62 = vsyncadd [#allocation6], 0
      %s64 = sshll.u32 [#allocation9], 4
      %s65 = int_to_ptr.vmem [resolvable:$true] %s64
      %s66 = sshll.u32 %s3, 4
      %s67 = int_to_ptr.hbm [resolvable:$true] %s66
      %69 = dma.vmem_to_hbm [thread:$0]  %s65, 128, %s67, [#allocation6]
    $region21: #{tpu_custom_call.1} parent=1 // pred_fallthru
      _
    // Predicated region
    $region22: #{tpu_custom_call.1} parent=1 // pred_check
      _
    $region23: #{tpu_custom_call.1} parent=1 // pred_check_branch
      %71 = sbr.rel (0) target = $region25
    $region24: #{tpu_custom_call.1} parent=1 // pred_region
      %73 = dma.done [#allocation6], 128
    $region25: #{tpu_custom_call.1} parent=1 // pred_fallthru
      _
    %74 = vsyncpa [#allocation5], 1
    %75 = vsyncpa [#allocation8], 1
    %76 = vsyncpa [#allocation6], 1

</llo_original>
